<compile_context>
chip_gen: v6e
topology: v6e:2x2x1
jax: 0.10.0
libtpu: 0.0.40
codegen_flags: <defaults>
</compile_context>

<pallas_src>
import functools

import jax
import jax.numpy as jnp
import numpy as np
from jax.experimental import pallas as pl
from jax.experimental.pallas import tpu as pltpu

D_EPS = 1e-9
_LANE = 128


def _relaxed_relu_kernel(*refs, use_lambda: bool, num_err: int, num_adv: int):
    """Elementwise DeepZ ReLU relaxation over one (..., tF) feature tile."""
    it = iter(refs)
    lb_ref = next(it)
    ub_ref = next(it)
    lam_ref = next(it) if use_lambda else None
    head_ref = next(it)
    err_ref = next(it) if num_err > 0 else None
    adv_ref = next(it) if num_adv > 0 else None
    head_out_ref = next(it)
    err_out_ref = next(it) if (num_err + num_adv) > 0 else None

    out_dtype = head_out_ref.dtype
    # Relaxation coefficients in f32 (D_EPS underflows in bf16).
    lb = lb_ref[...].astype(jnp.float32)                 # (B, tF)
    ub = ub_ref[...].astype(jnp.float32)
    slope = ub / (ub - lb + D_EPS)

    if use_lambda:
        relu_lambda = lam_ref[...].astype(jnp.float32)   # (1, tF) -> bcast over B
        relu_mu = jnp.where(relu_lambda < slope,
                            0.5 * ub * (1.0 - relu_lambda),
                            -0.5 * relu_lambda * lb)
    else:
        relu_lambda = slope
        relu_mu = -0.5 * slope * lb

    is_cross = (lb < 0.0) & (ub > 0.0)
    lam_c = jnp.where(is_cross, relu_lambda, (lb >= 0.0).astype(jnp.float32))
    mu_c = jnp.where(is_cross, relu_mu, 0.0)

    # New head: x * lambda + mu
    head_out_ref[...] = (head_ref[...].astype(jnp.float32) * lam_c
                         + mu_c).astype(out_dtype)

    # Existing error terms scaled by lambda; new error terms = mu * adv_errors.
    # tF (last dim) is a multiple of 128 so both writes are lane-dense.
    if num_err > 0:
        err_out_ref[:, :num_err, :] = (
            err_ref[...].astype(jnp.float32) * lam_c[:, None, :]).astype(out_dtype)
    if num_adv > 0:
        err_out_ref[:, num_err:, :] = (
            adv_ref[...].astype(jnp.float32) * mu_c[:, None, :]).astype(out_dtype)


def _round_up(x, m):
    return (x + m - 1) // m * m


def _ceil8(x):
    return _round_up(x, 8)


def relaxed_relu(curr_head, curr_errors, adv_errors, lb, ub, deepz_lambda=None,
                 zono_iter=False, target_block_bytes=None):
    """Pallas implementation of RelaxedReLU.forward (k=None / adv_errors path).

    Args (NCHW conventions, matching the PyTorch module):
      curr_head   : (B, C, H, W)
      curr_errors : (B*E, C, H, W)   (viewed as (B, E, C, H, W))
      adv_errors  : (B, K, C, H, W)
      lb, ub      : (B, C, H, W)     (self.bounds)
      deepz_lambda: (1, C, H, W)     (only used when zono_iter=True)

    Returns:
      new_head   : (B, C, H, W)
      new_errors : (B*(E+K), C, H, W)
    """
    B = curr_head.shape[0]
    feat_shape = curr_head.shape[1:]
    F = int(np.prod(feat_shape))
    E = curr_errors.shape[0] // B
    K = adv_errors.shape[1]
    dtype = curr_head.dtype
    itemsize = jnp.dtype(dtype).itemsize
    use_lambda = bool(zono_iter) and (deepz_lambda is not None)

    # ---- copy-free flattening to the (..., F) layout ----
    head2 = curr_head.reshape(B, F)
    lb2 = lb.reshape(B, F)
    ub2 = ub.reshape(B, F)
    err3 = curr_errors.reshape(B, E, F)
    adv3 = adv_errors.reshape(B, K, F)
    lam2 = deepz_lambda.reshape(1, F) if use_lambda else None

    # ---- tile sizing ----
    # HBM bytes streamed per feature column: lb+ub+head in, head out (=4),
    # E+K error inputs and E+K error outputs (all batched), + 1 lambda stream.
    per_feat_hbm = itemsize * (B * (4 + 2 * (E + K)) + (1 if use_lambda else 0))
    # VMEM bytes per feature column (second-minor block dims pad to 8 sublanes).
    per_feat_vmem = itemsize * (
        4 * _ceil8(B)
        + (_ceil8(1) if use_lambda else 0)
        + B * (_ceil8(E) if E else 0)
        + B * (_ceil8(K) if K else 0)
        + B * (_ceil8(E + K) if (E + K) else 0))

    try:
        vmem_capacity = int(pltpu.get_tpu_info().vmem_capacity_bytes)
    except Exception:  # conservative fallback = smallest per-TC VMEM (v7x)
        vmem_capacity = 64 << 20
    # Leave at least half of VMEM for surrounding XLA fusions; never above 40 MiB.
    vmem_budget = min(vmem_capacity // 2, 40 << 20)
    if target_block_bytes is None:
        # ~16 MiB/step on 128 MiB-VMEM parts (v5e/v6e), ~8 MiB on v7x.
        target_block_bytes = (16 << 20) if vmem_capacity >= (96 << 20) else (8 << 20)

    F_up = _round_up(F, _LANE)
    tF = max(_LANE, (target_block_bytes // per_feat_hbm) // _LANE * _LANE)
    tF_vmem = max(_LANE,
                  ((vmem_budget - (4 << 20)) // (2 * per_feat_vmem)) // _LANE * _LANE)
    # TODO(synk): for very large B*(E+K) an innermost grid axis over error
    # chunks would bound per-step VMEM instead of relying on this clamp alone.
    tF = min(tF, tF_vmem, F_up)

    steps = pl.cdiv(F_up, tF)
    # v7x: ("parallel",) shards the grid across 2 TensorCores -> prefer an even
    # step count once the problem is big enough for the split to matter.
    if per_feat_hbm * F >= (8 << 20) and steps % 2 == 1:
        steps += 1
        tF = max(_LANE, _round_up(pl.cdiv(F_up, steps), _LANE))
        steps = pl.cdiv(F_up, tF)
    grid = (steps,)

    per_step_vmem = 2 * per_feat_vmem * tF            # double-buffered blocks
    vmem_limit = int(min(max(per_step_vmem + (4 << 20), 16 << 20), vmem_budget))

    # ---- specs ----
    spec_bf = pl.BlockSpec((B, tF), lambda j: (0, j))

    inputs = [lb2, ub2]
    in_specs = [spec_bf, spec_bf]
    if use_lambda:
        inputs.append(lam2)
        in_specs.append(pl.BlockSpec((1, tF), lambda j: (0, j)))
    inputs.append(head2)
    in_specs.append(spec_bf)
    if E > 0:
        inputs.append(err3)
        in_specs.append(pl.BlockSpec((B, E, tF), lambda j: (0, 0, j)))
    if K > 0:
        inputs.append(adv3)
        in_specs.append(pl.BlockSpec((B, K, tF), lambda j: (0, 0, j)))

    out_specs = [spec_bf]
    out_shapes = [jax.ShapeDtypeStruct((B, F), dtype)]
    if E + K > 0:
        out_specs.append(pl.BlockSpec((B, E + K, tF), lambda j: (0, 0, j)))
        out_shapes.append(jax.ShapeDtypeStruct((B, E + K, F), dtype))

    kernel = functools.partial(_relaxed_relu_kernel, use_lambda=use_lambda,
                               num_err=E, num_adv=K)

    outs = pl.pallas_call(
        kernel,
        out_shape=tuple(out_shapes),
        grid_spec=pltpu.PrefetchScalarGridSpec(
            num_scalar_prefetch=0,
            grid=grid,
            in_specs=in_specs,
            out_specs=tuple(out_specs)),
        compiler_params=pltpu.CompilerParams(
            dimension_semantics=("parallel",),
            vmem_limit_bytes=vmem_limit),
    )(*inputs)
    if not isinstance(outs, (tuple, list)):
        outs = (outs,)

    new_head = outs[0].reshape(B, *feat_shape)
    if E + K > 0:
        new_errors = outs[1].reshape(B * (E + K), *feat_shape)
    else:
        new_errors = jnp.zeros((0,) + tuple(feat_shape), dtype)
    return new_head, new_errors


def _reference(curr_head, curr_errors, adv_errors, lb, ub, deepz_lambda, zono_iter):
    """Pure-JAX port of the PyTorch forward (k=None path), for verification."""
    B = curr_head.shape[0]
    feat = curr_head.shape[1:]
    err = curr_errors.reshape(B, -1, *feat)
    is_cross = (lb < 0) & (ub > 0)
    slope = ub / (ub - lb + D_EPS)
    if zono_iter and deepz_lambda is not None:
        relu_lambda = jnp.broadcast_to(deepz_lambda, lb.shape)
        relu_mu = jnp.where(relu_lambda < slope,
                            0.5 * ub * (1 - relu_lambda),
                            -0.5 * relu_lambda * lb)
    else:
        relu_lambda = slope
        relu_mu = -0.5 * relu_lambda * lb
    lam_c = jnp.where(is_cross, relu_lambda, (lb >= 0).astype(jnp.float32))
    mu_c = jnp.where(is_cross, relu_mu, jnp.zeros_like(relu_mu))
    head = curr_head * lam_c + mu_c
    err = err * lam_c[:, None]
    new_err = mu_c[:, None] * adv_errors
    err = jnp.concatenate([err, new_err], axis=1)
    return head, err.reshape(-1, *feat)


def _run_case(B, C, H, W, E, K, key):
    k1, k2, k3, k4, k5 = jax.random.split(key, 5)
    curr_head = jax.random.normal(k1, (B, C, H, W), dtype=jnp.float32)
    curr_errors = jax.random.normal(k2, (B * E, C, H, W), dtype=jnp.float32)
    adv_errors = jax.random.normal(k3, (B, K, C, H, W), dtype=jnp.float32)
    # Bounds with ub > lb and a mix of crossing / non-crossing neurons.
    lb = jax.random.normal(k4, (B, C, H, W), dtype=jnp.float32) - 0.3
    ub = lb + jnp.abs(jax.random.normal(k5, (B, C, H, W), dtype=jnp.float32)) + 0.1
    deepz_lambda = jnp.full((1, C, H, W), 0.5, dtype=jnp.float32)

    for zono_iter in (False, True):
        new_head, new_errors = relaxed_relu(
            curr_head, curr_errors, adv_errors, lb, ub, deepz_lambda,
            zono_iter=zono_iter)
        jax.block_until_ready((new_head, new_errors))

        ref_head, ref_errors = _reference(
            curr_head, curr_errors, adv_errors, lb, ub, deepz_lambda, zono_iter)
        np.testing.assert_allclose(np.asarray(new_head), np.asarray(ref_head),
                                   rtol=1e-5, atol=1e-5)
        np.testing.assert_allclose(np.asarray(new_errors), np.asarray(ref_errors),
                                   rtol=1e-5, atol=1e-5)


if __name__ == "__main__":
    key = jax.random.PRNGKey(0)
    k_a, k_b, k_c = jax.random.split(key, 3)

    # Small shapes consistent with a conv activation: B=2, C=4, H=W=16 (F=1024).
    _run_case(B=2, C=4, H=16, W=16, E=3, K=2, key=k_a)
    # Feature size that is NOT a multiple of 128 (ragged last block, no padding).
    _run_case(B=2, C=3, H=7, W=7, E=3, K=2, key=k_b)
    # K == 0 edge case (guarded store path).
    _run_case(B=2, C=4, H=16, W=16, E=3, K=0, key=k_c)

    # TODO(synk): the k-is-not-None branch samples random Cauchy noise
    # (my_cauchy); only the adv_errors (k=None) path is implemented here.

    print("KERNEL_OK")
</pallas_src>

<mosaic_0001>
module attributes {stable_mosaic.version = 11 : i64} {
  func.func @_relaxed_relu_kernel(%arg0: i32, %arg1: memref<2x1024xf32, #tpu.memory_space<vmem>>, %arg2: memref<2x1024xf32, #tpu.memory_space<vmem>>, %arg3: memref<2x1024xf32, #tpu.memory_space<vmem>>, %arg4: memref<2x3x1024xf32, #tpu.memory_space<vmem>>, %arg5: memref<2x2x1024xf32, #tpu.memory_space<vmem>>, %arg6: memref<2x1024xf32, #tpu.memory_space<vmem>>, %arg7: memref<2x5x1024xf32, #tpu.memory_space<vmem>>) attributes {dimension_semantics = [#tpu.dimension_semantics<parallel>], iteration_bounds = array<i64: 1>, scalar_prefetch = 0 : i64, scratch_operands = 0 : i64, tpu.core_type = #tpu.core_type<tc>, window_params = [{transform_indices = @transform_0, window_bounds = array<i64: 2, 1024>}, {transform_indices = @transform_1, window_bounds = array<i64: 2, 1024>}, {transform_indices = @transform_2, window_bounds = array<i64: 2, 1024>}, {transform_indices = @transform_3, window_bounds = array<i64: 2, 3, 1024>}, {transform_indices = @transform_4, window_bounds = array<i64: 2, 2, 1024>}, {transform_indices = @transform_5, window_bounds = array<i64: 2, 1024>}, {transform_indices = @transform_6, window_bounds = array<i64: 2, 5, 1024>}]} {
    %c0 = arith.constant 0 : index
    %c0_0 = arith.constant 0 : index
    %0 = vector.load %arg1[%c0, %c0_0] : memref<2x1024xf32, #tpu.memory_space<vmem>>, vector<2x1024xf32>
    %c0_1 = arith.constant 0 : index
    %c0_2 = arith.constant 0 : index
    %1 = vector.load %arg2[%c0_1, %c0_2] : memref<2x1024xf32, #tpu.memory_space<vmem>>, vector<2x1024xf32>
    %2 = arith.subf %1, %0 : vector<2x1024xf32>
    %cst = arith.constant 9.99999971E-10 : f32
    %3 = vector.broadcast %cst : f32 to vector<2x1024xf32>
    %4 = arith.addf %2, %3 : vector<2x1024xf32>
    %5 = arith.divf %1, %4 : vector<2x1024xf32>
    %cst_3 = arith.constant -5.000000e-01 : f32
    %6 = vector.broadcast %cst_3 : f32 to vector<2x1024xf32>
    %7 = arith.mulf %6, %5 : vector<2x1024xf32>
    %8 = arith.mulf %7, %0 : vector<2x1024xf32>
    %cst_4 = arith.constant 0.000000e+00 : f32
    %9 = vector.broadcast %cst_4 : f32 to vector<2x1024xf32>
    %10 = arith.cmpf olt, %0, %9 : vector<2x1024xf32>
    %cst_5 = arith.constant 0.000000e+00 : f32
    %11 = vector.broadcast %cst_5 : f32 to vector<2x1024xf32>
    %12 = arith.cmpf ogt, %1, %11 : vector<2x1024xf32>
    %13 = arith.andi %10, %12 : vector<2x1024xi1>
    %cst_6 = arith.constant 0.000000e+00 : f32
    %14 = vector.broadcast %cst_6 : f32 to vector<2x1024xf32>
    %15 = arith.cmpf oge, %0, %14 : vector<2x1024xf32>
    %16 = arith.extui %15 : vector<2x1024xi1> to vector<2x1024xi32>
    %17 = arith.sitofp %16 : vector<2x1024xi32> to vector<2x1024xf32>
    %18 = arith.select %13, %5, %17 : vector<2x1024xi1>, vector<2x1024xf32>
    %cst_7 = arith.constant 0.000000e+00 : f32
    %19 = vector.broadcast %cst_7 : f32 to vector<2x1024xf32>
    %20 = arith.select %13, %8, %19 : vector<2x1024xi1>, vector<2x1024xf32>
    %c0_8 = arith.constant 0 : index
    %c0_9 = arith.constant 0 : index
    %21 = vector.load %arg3[%c0_8, %c0_9] : memref<2x1024xf32, #tpu.memory_space<vmem>>, vector<2x1024xf32>
    %22 = arith.mulf %21, %18 : vector<2x1024xf32>
    %23 = arith.addf %22, %20 : vector<2x1024xf32>
    %c0_10 = arith.constant 0 : index
    %c0_11 = arith.constant 0 : index
    %24 = vector.load %arg6[%c0_10, %c0_11] : memref<2x1024xf32, #tpu.memory_space<vmem>>, vector<2x1024xf32>
    tpu.vector_store %arg6[%c0_10, %c0_11], %23 {strides = array<i32>} : memref<2x1024xf32, #tpu.memory_space<vmem>>, vector<2x1024xf32>,
    %c0_12 = arith.constant 0 : index
    %c0_13 = arith.constant 0 : index
    %c0_14 = arith.constant 0 : index
    %25 = vector.load %arg4[%c0_12, %c0_13, %c0_14] : memref<2x3x1024xf32, #tpu.memory_space<vmem>>, vector<2x3x1024xf32>
    %26 = vector.shape_cast %18 : vector<2x1024xf32> to vector<2x1x1024xf32>
    %27 = vector.broadcast %26 : vector<2x1x1024xf32> to vector<2x3x1024xf32>
    %28 = arith.mulf %25, %27 : vector<2x3x1024xf32>
    %c0_15 = arith.constant 0 : index
    %c0_16 = arith.constant 0 : index
    %c0_17 = arith.constant 0 : index
    %29 = vector.load %arg7[%c0_15, %c0_16, %c0_17] : memref<2x5x1024xf32, #tpu.memory_space<vmem>>, vector<2x3x1024xf32>
    tpu.vector_store %arg7[%c0_15, %c0_16, %c0_17], %28 {strides = array<i32>} : memref<2x5x1024xf32, #tpu.memory_space<vmem>>, vector<2x3x1024xf32>,
    %c0_18 = arith.constant 0 : index
    %c0_19 = arith.constant 0 : index
    %c0_20 = arith.constant 0 : index
    %30 = vector.load %arg5[%c0_18, %c0_19, %c0_20] : memref<2x2x1024xf32, #tpu.memory_space<vmem>>, vector<2x2x1024xf32>
    %31 = vector.shape_cast %20 : vector<2x1024xf32> to vector<2x1x1024xf32>
    %32 = vector.broadcast %31 : vector<2x1x1024xf32> to vector<2x2x1024xf32>
    %33 = arith.mulf %30, %32 : vector<2x2x1024xf32>
    %c0_21 = arith.constant 0 : index
    %c3 = arith.constant 3 : index
    %c0_22 = arith.constant 0 : index
    %34 = vector.load %arg7[%c0_21, %c3, %c0_22] : memref<2x5x1024xf32, #tpu.memory_space<vmem>>, vector<2x2x1024xf32>
    tpu.vector_store %arg7[%c0_21, %c3, %c0_22], %33 {strides = array<i32>} : memref<2x5x1024xf32, #tpu.memory_space<vmem>>, vector<2x2x1024xf32>,
    return
  }
  func.func @transform_0(%arg0: i32) -> (i32, i32) {
    %c0_i32 = arith.constant 0 : i32
    %c0_i32_0 = arith.constant 0 : i32
    return %c0_i32, %arg0 : i32, i32
  }
  func.func @transform_1(%arg0: i32) -> (i32, i32) {
    %c0_i32 = arith.constant 0 : i32
    %c0_i32_0 = arith.constant 0 : i32
    return %c0_i32, %arg0 : i32, i32
  }
  func.func @transform_2(%arg0: i32) -> (i32, i32) {
    %c0_i32 = arith.constant 0 : i32
    %c0_i32_0 = arith.constant 0 : i32
    return %c0_i32, %arg0 : i32, i32
  }
  func.func @transform_3(%arg0: i32) -> (i32, i32, i32) {
    %c0_i32 = arith.constant 0 : i32
    %c0_i32_0 = arith.constant 0 : i32
    %c0_i32_1 = arith.constant 0 : i32
    return %c0_i32, %c0_i32_0, %arg0 : i32, i32, i32
  }
  func.func @transform_4(%arg0: i32) -> (i32, i32, i32) {
    %c0_i32 = arith.constant 0 : i32
    %c0_i32_0 = arith.constant 0 : i32
    %c0_i32_1 = arith.constant 0 : i32
    return %c0_i32, %c0_i32_0, %arg0 : i32, i32, i32
  }
  func.func @transform_5(%arg0: i32) -> (i32, i32) {
    %c0_i32 = arith.constant 0 : i32
    %c0_i32_0 = arith.constant 0 : i32
    return %c0_i32, %arg0 : i32, i32
  }
  func.func @transform_6(%arg0: i32) -> (i32, i32, i32) {
    %c0_i32 = arith.constant 0 : i32
    %c0_i32_0 = arith.constant 0 : i32
    %c0_i32_1 = arith.constant 0 : i32
    return %c0_i32, %c0_i32_0, %arg0 : i32, i32, i32
  }
}

</mosaic_0001>

<llo_original>
// kernel: tpu_custom_call.1
$region0: #{tpu_custom_call.1}
  #allocation0 [shape = 'u32[]', space=smem, size = 0x4, offset = 0x4, fixed_abs, tag = 'smem constant byte address 0x4 - core index']
  #allocation1 [shape = 'u32[144,128]{1,0:T(1,128)}', space=vmem, size = 0x12000, scoped, tag = 'internal scratch']
  %s0 = inlined_call_operand.vmem [shape: f32[2,1024], index: 0, kind: input, shape index: {}]
  %s1 = inlined_call_operand.vmem [shape: f32[2,1024], index: 1, kind: input, shape index: {}]
  %s2 = inlined_call_operand.vmem [shape: f32[2,1024], index: 2, kind: input, shape index: {}]
  %s3 = inlined_call_operand.vmem [shape: f32[2,3,1024], index: 3, kind: input, shape index: {}]
  %s4 = inlined_call_operand.vmem [shape: f32[2,2,1024], index: 4, kind: input, shape index: {}]
  %s5 = inlined_call_operand.hbm [shape: f32[2,1024], index: 5, kind: output, shape index: {0}]
  %s6 = inlined_call_operand.vmem [shape: f32[2,5,1024], index: 6, kind: output, shape index: {1}]
  %7 = xla_tuple %s5, %s6
  %s8 = sld [smem:[#allocation0]]
  $region38: #{tpu_custom_call.1} parent=0
    _
  %s10 = ssub.s32 1, %s8
  %s11 = scalar_select 0, %s10, %s8
  $region1: #{tpu_custom_call.1} parent=0
    #allocation2 [shape = 'u8[8192]{0}', space=vmem, size = 0x2000, scoped, tag = 'output window, operand 0, single buffered']
    #allocation3 [shape = 's32[1]{0}', space=sflag, size = 0x4, scoped, tag = 'scoped memory for tpu_custom_call.1']
    %12 = vsyncpa [#allocation3], 0
    // Predicated region
    $region2: #{tpu_custom_call.1} parent=1 // pred_check
      _
    $region3: #{tpu_custom_call.1} parent=1 // pred_check_branch
      %14 = sbr.rel (0) target = $region5
    $region4: #{tpu_custom_call.1} parent=1 // pred_region
      _
    $region5: #{tpu_custom_call.1} parent=1 // pred_fallthru
      _
    // Predicated region
    $region6: #{tpu_custom_call.1} parent=1 // pred_check
      _
    $region7: #{tpu_custom_call.1} parent=1 // pred_check_branch
      %16 = sbr.rel (0) target = $region9
    $region8: #{tpu_custom_call.1} parent=1 // pred_region
      _
    $region9: #{tpu_custom_call.1} parent=1 // pred_fallthru
      _
    // Predicated region
    $region10: #{tpu_custom_call.1} parent=1 // pred_check
      _
    $region11: #{tpu_custom_call.1} parent=1 // pred_check_branch
      %18 = sbr.rel (0) target = $region13
    $region12: #{tpu_custom_call.1} parent=1 // pred_region
      _
    $region13: #{tpu_custom_call.1} parent=1 // pred_fallthru
      _
    // Predicated region
    $region14: #{tpu_custom_call.1} parent=1 // pred_check
      _
    $region15: #{tpu_custom_call.1} parent=1 // pred_check_branch
      %20 = sbr.rel (0) target = $region17
    $region16: #{tpu_custom_call.1} parent=1 // pred_region
      _
    $region17: #{tpu_custom_call.1} parent=1 // pred_fallthru
      _
    // Predicated region
    $region18: #{tpu_custom_call.1} parent=1 // pred_check
      _
    $region19: #{tpu_custom_call.1} parent=1 // pred_check_branch
      %22 = sbr.rel (0) target = $region21
    $region20: #{tpu_custom_call.1} parent=1 // pred_region
      _
    $region21: #{tpu_custom_call.1} parent=1 // pred_fallthru
      _
    %v23 = vld [vmem:[%s0] sm:$0xff]
    %v24 = vld [vmem:[%s0 + $0x8] sm:$0xff]
    %v25 = vld [vmem:[%s1] sm:$0xff]
    %v26 = vld [vmem:[%s1 + $0x8] sm:$0xff]
    %v27 = vsub.f32 %v25, %v23
    %v28 = vsub.f32 %v26, %v24
    %v29 = vadd.f32 %v27, 1e-09
    %v30 = vadd.f32 %v28, 1e-09
    %v31 = vrcp.pop %v29
    %v32 = vmul.f32 %v25, %v31
    %v33 = vrcp.pop %v30
    %v34 = vmul.f32 %v26, %v33
    %v35 = vmul.f32 %v32, -0.5
    %v36 = vmul.f32 %v34, -0.5
    %v37 = vmul.f32 %v35, %v23
    %v38 = vmul.f32 %v36, %v24
    %vm39 = vcmp.lt.f32.partialorder %v23, 0.0
    %vm40 = vcmp.lt.f32.partialorder %v24, 0.0
    %vm41 = vcmp.gt.f32.partialorder %v25, 0.0
    %vm42 = vcmp.gt.f32.partialorder %v26, 0.0
    %vm43 = vmand %vm39, %vm41
    %vm44 = vmand %vm40, %vm42
    %vm45 = vcmp.ge.f32.partialorder %v23, 0.0
    %vm46 = vcmp.ge.f32.partialorder %v24, 0.0
    %v47 = vsel %vm45, 1, 0
    %v48 = vsel %vm46, 1, 0
    %v49 = vcvt.s32.f32 %v47
    %v50 = vcvt.s32.f32 %v48
    %v51 = vsel %vm43, %v32, %v49
    %v52 = vsel %vm44, %v34, %v50
    %v53 = vsel %vm43, %v37, 0.0
    %v54 = vsel %vm44, %v38, 0.0
    %v55 = vld [vmem:[%s2] sm:$0xff]
    %v56 = vld [vmem:[%s2 + $0x8] sm:$0xff]
    %v57 = vmul.f32 %v55, %v51
    %v58 = vmul.f32 %v56, %v52
    %v59 = vadd.f32 %v57, %v53
    %v60 = vadd.f32 %v58, %v54
    %61 = vst [vmem:[#allocation2] sm:$0xff] %v59
    %62 = vst [vmem:[#allocation2 + $0x8] sm:$0xff] %v60
    %v63 = vld [vmem:[%s3] sm:$0x77]
    %v64 = vld [vmem:[%s3 + $0x8] sm:$0x77]
    %v65 = vld [vmem:[%s3 + $0x10] sm:$0x77]
    %v66 = vld [vmem:[%s3 + $0x18] sm:$0x77]
    %v67 = vld [vmem:[%s3 + $0x20] sm:$0x77]
    %v68 = vld [vmem:[%s3 + $0x28] sm:$0x77]
    %v69 = vld [vmem:[%s3 + $0x30] sm:$0x77]
    %v70 = vld [vmem:[%s3 + $0x38] sm:$0x77]
    %v74 = vunpack.c.l.s4 1966171168
    %v75 = vunpack.c.0.s8 %v74
    %v76 = vlaneseq
    %v77 = vshrl.u32 %v76, 7
    %v78 = vsub.s32 %v75, %v77
    %v79 = vrot.slane %v51, %v78
    %v81 = vunpack.c.l.s4 1966171168
    %v82 = vunpack.c.0.s8 %v81
    %v83 = vlaneseq
    %v84 = vshrl.u32 %v83, 7
    %v85 = vsub.s32 %v82, %v84
    %v86 = vrot.slane %v52, %v85
    %v87 = vcombine.low %v79, %v86
    %v88 = vcombine.high %v79, %v86
    %v89 = vlaneseq
    %v90 = vshrl.u32 %v89, 7
    %v91 = vsub.s32 0, %v90
    %v92 = vrot.slane %v87, %v91
    %v93 = vlaneseq
    %v94 = vshrl.u32 %v93, 7
    %v95 = vsub.s32 1, %v94
    %v96 = vrot.slane %v87, %v95
    %v97 = vlaneseq
    %v98 = vshrl.u32 %v97, 7
    %v99 = vsub.s32 2, %v98
    %v100 = vrot.slane %v87, %v99
    %v101 = vlaneseq
    %v102 = vshrl.u32 %v101, 7
    %v103 = vsub.s32 3, %v102
    %v104 = vrot.slane %v87, %v103
    %v105 = vlaneseq
    %v106 = vshrl.u32 %v105, 7
    %v107 = vsub.s32 4, %v106
    %v108 = vrot.slane %v87, %v107
    %v109 = vlaneseq
    %v110 = vshrl.u32 %v109, 7
    %v111 = vsub.s32 5, %v110
    %v112 = vrot.slane %v87, %v111
    %v113 = vlaneseq
    %v114 = vshrl.u32 %v113, 7
    %v115 = vsub.s32 6, %v114
    %v116 = vrot.slane %v87, %v115
    %v117 = vlaneseq
    %v118 = vshrl.u32 %v117, 7
    %v119 = vsub.s32 7, %v118
    %v120 = vrot.slane %v87, %v119
    %v121 = vlaneseq
    %v122 = vshrl.u32 %v121, 7
    %v123 = vsub.s32 0, %v122
    %v124 = vrot.slane %v88, %v123
    %v125 = vlaneseq
    %v126 = vshrl.u32 %v125, 7
    %v127 = vsub.s32 1, %v126
    %v128 = vrot.slane %v88, %v127
    %v129 = vlaneseq
    %v130 = vshrl.u32 %v129, 7
    %v131 = vsub.s32 2, %v130
    %v132 = vrot.slane %v88, %v131
    %v133 = vlaneseq
    %v134 = vshrl.u32 %v133, 7
    %v135 = vsub.s32 3, %v134
    %v136 = vrot.slane %v88, %v135
    %v137 = vlaneseq
    %v138 = vshrl.u32 %v137, 7
    %v139 = vsub.s32 4, %v138
    %v140 = vrot.slane %v88, %v139
    %v141 = vlaneseq
    %v142 = vshrl.u32 %v141, 7
    %v143 = vsub.s32 5, %v142
    %v144 = vrot.slane %v88, %v143
    %v145 = vlaneseq
    %v146 = vshrl.u32 %v145, 7
    %v147 = vsub.s32 6, %v146
    %v148 = vrot.slane %v88, %v147
    %v149 = vlaneseq
    %v150 = vshrl.u32 %v149, 7
    %v151 = vsub.s32 7, %v150
    %v152 = vrot.slane %v88, %v151
    %v153 = vcombine.low %v92, %v96
    %v154 = vcombine.low %v100, %v104
    %v155 = vcombine.low %v108, %v112
    %v156 = vcombine.low %v116, %v120
    %v157 = vcombine.low %v124, %v128
    %v158 = vcombine.low %v132, %v136
    %v159 = vcombine.low %v140, %v144
    %v160 = vcombine.low %v148, %v152
    %v169 = vmul.f32 %v63, %v153
    %v170 = vmul.f32 %v64, %v154
    %v171 = vmul.f32 %v65, %v155
    %v172 = vmul.f32 %v66, %v156
    %v173 = vmul.f32 %v67, %v157
    %v174 = vmul.f32 %v68, %v158
    %v175 = vmul.f32 %v69, %v159
    %v176 = vmul.f32 %v70, %v160
    %v185 = vcombine.high %v169, %v169
    %v186 = vcombine.high %v170, %v170
    %v187 = vcombine.high %v171, %v171
    %v188 = vcombine.high %v172, %v172
    %v189 = vcombine.high %v173, %v173
    %v190 = vcombine.high %v174, %v174
    %v191 = vcombine.high %v175, %v175
    %v192 = vcombine.high %v176, %v176
    %201 = vst [vmem:[%s6] sm:$0x7] %v169
    %202 = vst [vmem:[%s6 + $0x8] sm:$0x7] %v185
    %203 = vst [vmem:[%s6 + $0x10] sm:$0x7] %v170
    %204 = vst [vmem:[%s6 + $0x18] sm:$0x7] %v186
    %205 = vst [vmem:[%s6 + $0x20] sm:$0x7] %v171
    %206 = vst [vmem:[%s6 + $0x28] sm:$0x7] %v187
    %207 = vst [vmem:[%s6 + $0x30] sm:$0x7] %v172
    %208 = vst [vmem:[%s6 + $0x38] sm:$0x7] %v188
    %209 = vst [vmem:[%s6 + $0x40] sm:$0x7] %v173
    %210 = vst [vmem:[%s6 + $0x48] sm:$0x7] %v189
    %211 = vst [vmem:[%s6 + $0x50] sm:$0x7] %v174
    %212 = vst [vmem:[%s6 + $0x58] sm:$0x7] %v190
    %213 = vst [vmem:[%s6 + $0x60] sm:$0x7] %v175
    %214 = vst [vmem:[%s6 + $0x68] sm:$0x7] %v191
    %215 = vst [vmem:[%s6 + $0x70] sm:$0x7] %v176
    %216 = vst [vmem:[%s6 + $0x78] sm:$0x7] %v192
    %v217 = vld [vmem:[%s4] sm:$0xff]
    %v218 = vld [vmem:[%s4 + $0x8] sm:$0xff]
    %v219 = vld [vmem:[%s4 + $0x10] sm:$0xff]
    %v220 = vld [vmem:[%s4 + $0x18] sm:$0xff]
    %v224 = vunpack.c.l.s4 1966171168
    %v225 = vunpack.c.0.s8 %v224
    %v226 = vlaneseq
    %v227 = vshrl.u32 %v226, 7
    %v228 = vsub.s32 %v225, %v227
    %v229 = vrot.slane %v53, %v228
    %v231 = vunpack.c.l.s4 1966171168
    %v232 = vunpack.c.0.s8 %v231
    %v233 = vlaneseq
    %v234 = vshrl.u32 %v233, 7
    %v235 = vsub.s32 %v232, %v234
    %v236 = vrot.slane %v54, %v235
    %v237 = vcombine.low %v229, %v236
    %v238 = vcombine.high %v229, %v236
    %v239 = vlaneseq
    %v240 = vshrl.u32 %v239, 7
    %v241 = vsub.s32 0, %v240
    %v242 = vrot.slane %v237, %v241
    %v243 = vlaneseq
    %v244 = vshrl.u32 %v243, 7
    %v245 = vsub.s32 1, %v244
    %v246 = vrot.slane %v237, %v245
    %v247 = vlaneseq
    %v248 = vshrl.u32 %v247, 7
    %v249 = vsub.s32 2, %v248
    %v250 = vrot.slane %v237, %v249
    %v251 = vlaneseq
    %v252 = vshrl.u32 %v251, 7
    %v253 = vsub.s32 3, %v252
    %v254 = vrot.slane %v237, %v253
    %v255 = vlaneseq
    %v256 = vshrl.u32 %v255, 7
    %v257 = vsub.s32 4, %v256
    %v258 = vrot.slane %v237, %v257
    %v259 = vlaneseq
    %v260 = vshrl.u32 %v259, 7
    %v261 = vsub.s32 5, %v260
    %v262 = vrot.slane %v237, %v261
    %v263 = vlaneseq
    %v264 = vshrl.u32 %v263, 7
    %v265 = vsub.s32 6, %v264
    %v266 = vrot.slane %v237, %v265
    %v267 = vlaneseq
    %v268 = vshrl.u32 %v267, 7
    %v269 = vsub.s32 7, %v268
    %v270 = vrot.slane %v237, %v269
    %v271 = vlaneseq
    %v272 = vshrl.u32 %v271, 7
    %v273 = vsub.s32 0, %v272
    %v274 = vrot.slane %v238, %v273
    %v275 = vlaneseq
    %v276 = vshrl.u32 %v275, 7
    %v277 = vsub.s32 1, %v276
    %v278 = vrot.slane %v238, %v277
    %v279 = vlaneseq
    %v280 = vshrl.u32 %v279, 7
    %v281 = vsub.s32 2, %v280
    %v282 = vrot.slane %v238, %v281
    %v283 = vlaneseq
    %v284 = vshrl.u32 %v283, 7
    %v285 = vsub.s32 3, %v284
    %v286 = vrot.slane %v238, %v285
    %v287 = vlaneseq
    %v288 = vshrl.u32 %v287, 7
    %v289 = vsub.s32 4, %v288
    %v290 = vrot.slane %v238, %v289
    %v291 = vlaneseq
    %v292 = vshrl.u32 %v291, 7
    %v293 = vsub.s32 5, %v292
    %v294 = vrot.slane %v238, %v293
    %v295 = vlaneseq
    %v296 = vshrl.u32 %v295, 7
    %v297 = vsub.s32 6, %v296
    %v298 = vrot.slane %v238, %v297
    %v299 = vlaneseq
    %v300 = vshrl.u32 %v299, 7
    %v301 = vsub.s32 7, %v300
    %v302 = vrot.slane %v238, %v301
    %v303 = vcombine.low %v242, %v246
    %v304 = vcombine.low %v250, %v254
    %v306 = vunpack.c.l.s4 1983009808
    %v307 = vunpack.c.0.s8 %v306
    %v308 = vlaneseq
    %v309 = vshrl.u32 %v308, 7
    %v310 = vsub.s32 %v307, %v309
    %v311 = vrot.slane %v303, %v310
    %v313 = vunpack.c.l.s4 1983009808
    %v314 = vunpack.c.0.s8 %v313
    %v315 = vlaneseq
    %v316 = vshrl.u32 %v315, 7
    %v317 = vsub.s32 %v314, %v316
    %v318 = vrot.slane %v304, %v317
    %v319 = vcombine.low %v311, %v318
    %v320 = vcombine.low %v258, %v262
    %v321 = vcombine.low %v266, %v270
    %v323 = vunpack.c.l.s4 1983009808
    %v324 = vunpack.c.0.s8 %v323
    %v325 = vlaneseq
    %v326 = vshrl.u32 %v325, 7
    %v327 = vsub.s32 %v324, %v326
    %v328 = vrot.slane %v320, %v327
    %v330 = vunpack.c.l.s4 1983009808
    %v331 = vunpack.c.0.s8 %v330
    %v332 = vlaneseq
    %v333 = vshrl.u32 %v332, 7
    %v334 = vsub.s32 %v331, %v333
    %v335 = vrot.slane %v321, %v334
    %v336 = vcombine.low %v328, %v335
    %v337 = vcombine.low %v274, %v278
    %v338 = vcombine.low %v282, %v286
    %v340 = vunpack.c.l.s4 1983009808
    %v341 = vunpack.c.0.s8 %v340
    %v342 = vlaneseq
    %v343 = vshrl.u32 %v342, 7
    %v344 = vsub.s32 %v341, %v343
    %v345 = vrot.slane %v337, %v344
    %v347 = vunpack.c.l.s4 1983009808
    %v348 = vunpack.c.0.s8 %v347
    %v349 = vlaneseq
    %v350 = vshrl.u32 %v349, 7
    %v351 = vsub.s32 %v348, %v350
    %v352 = vrot.slane %v338, %v351
    %v353 = vcombine.low %v345, %v352
    %v354 = vcombine.low %v290, %v294
    %v355 = vcombine.low %v298, %v302
    %v357 = vunpack.c.l.s4 1983009808
    %v358 = vunpack.c.0.s8 %v357
    %v359 = vlaneseq
    %v360 = vshrl.u32 %v359, 7
    %v361 = vsub.s32 %v358, %v360
    %v362 = vrot.slane %v354, %v361
    %v364 = vunpack.c.l.s4 1983009808
    %v365 = vunpack.c.0.s8 %v364
    %v366 = vlaneseq
    %v367 = vshrl.u32 %v366, 7
    %v368 = vsub.s32 %v365, %v367
    %v369 = vrot.slane %v355, %v368
    %v370 = vcombine.low %v362, %v369
    %v375 = vmul.f32 %v217, %v319
    %v376 = vmul.f32 %v218, %v336
    %v377 = vmul.f32 %v219, %v353
    %v378 = vmul.f32 %v220, %v370
    %v383 = vcombine.high %v375, %v375
    %v385 = vunpack.c.l.s4 1983009808
    %v386 = vunpack.c.0.s8 %v385
    %v387 = vlaneseq
    %v388 = vshrl.u32 %v387, 7
    %v389 = vsub.s32 %v386, %v388
    %v390 = vrot.slane %v375, %v389
    %v392 = vunpack.c.l.s4 1983009808
    %v393 = vunpack.c.0.s8 %v392
    %v394 = vlaneseq
    %v395 = vshrl.u32 %v394, 7
    %v396 = vsub.s32 %v393, %v395
    %v397 = vrot.slane %v383, %v396
    %v398 = vcombine.high %v390, %v390
    %v399 = vcombine.high %v397, %v397
    %v400 = vcombine.high %v376, %v376
    %v402 = vunpack.c.l.s4 1983009808
    %v403 = vunpack.c.0.s8 %v402
    %v404 = vlaneseq
    %v405 = vshrl.u32 %v404, 7
    %v406 = vsub.s32 %v403, %v405
    %v407 = vrot.slane %v376, %v406
    %v409 = vunpack.c.l.s4 1983009808
    %v410 = vunpack.c.0.s8 %v409
    %v411 = vlaneseq
    %v412 = vshrl.u32 %v411, 7
    %v413 = vsub.s32 %v410, %v412
    %v414 = vrot.slane %v400, %v413
    %v415 = vcombine.high %v407, %v407
    %v416 = vcombine.high %v414, %v414
    %v417 = vcombine.high %v377, %v377
    %v419 = vunpack.c.l.s4 1983009808
    %v420 = vunpack.c.0.s8 %v419
    %v421 = vlaneseq
    %v422 = vshrl.u32 %v421, 7
    %v423 = vsub.s32 %v420, %v422
    %v424 = vrot.slane %v377, %v423
    %v426 = vunpack.c.l.s4 1983009808
    %v427 = vunpack.c.0.s8 %v426
    %v428 = vlaneseq
    %v429 = vshrl.u32 %v428, 7
    %v430 = vsub.s32 %v427, %v429
    %v431 = vrot.slane %v417, %v430
    %v432 = vcombine.high %v424, %v424
    %v433 = vcombine.high %v431, %v431
    %v434 = vcombine.high %v378, %v378
    %v436 = vunpack.c.l.s4 1983009808
    %v437 = vunpack.c.0.s8 %v436
    %v438 = vlaneseq
    %v439 = vshrl.u32 %v438, 7
    %v440 = vsub.s32 %v437, %v439
    %v441 = vrot.slane %v378, %v440
    %v443 = vunpack.c.l.s4 1983009808
    %v444 = vunpack.c.0.s8 %v443
    %v445 = vlaneseq
    %v446 = vshrl.u32 %v445, 7
    %v447 = vsub.s32 %v444, %v446
    %v448 = vrot.slane %v434, %v447
    %v449 = vcombine.high %v441, %v441
    %v450 = vcombine.high %v448, %v448
    %v451 = vrot.slane %v390, 5
    %v452 = vrot.slane %v398, 5
    %v453 = vrot.slane %v397, 5
    %v454 = vrot.slane %v399, 5
    %v455 = vrot.slane %v407, 5
    %v456 = vrot.slane %v415, 5
    %v457 = vrot.slane %v414, 5
    %v458 = vrot.slane %v416, 5
    %v459 = vrot.slane %v424, 5
    %v460 = vrot.slane %v432, 5
    %v461 = vrot.slane %v431, 5
    %v462 = vrot.slane %v433, 5
    %v463 = vrot.slane %v441, 5
    %v464 = vrot.slane %v449, 5
    %v465 = vrot.slane %v448, 5
    %v466 = vrot.slane %v450, 5
    %483 = vst [vmem:[%s6] sm:$0x18] %v451
    %484 = vst [vmem:[%s6 + $0x8] sm:$0x18] %v452
    %485 = vst [vmem:[%s6 + $0x10] sm:$0x18] %v453
    %486 = vst [vmem:[%s6 + $0x18] sm:$0x18] %v454
    %487 = vst [vmem:[%s6 + $0x20] sm:$0x18] %v455
    %488 = vst [vmem:[%s6 + $0x28] sm:$0x18] %v456
    %489 = vst [vmem:[%s6 + $0x30] sm:$0x18] %v457
    %490 = vst [vmem:[%s6 + $0x38] sm:$0x18] %v458
    %491 = vst [vmem:[%s6 + $0x40] sm:$0x18] %v459
    %492 = vst [vmem:[%s6 + $0x48] sm:$0x18] %v460
    %493 = vst [vmem:[%s6 + $0x50] sm:$0x18] %v461
    %494 = vst [vmem:[%s6 + $0x58] sm:$0x18] %v462
    %495 = vst [vmem:[%s6 + $0x60] sm:$0x18] %v463
    %496 = vst [vmem:[%s6 + $0x68] sm:$0x18] %v464
    %497 = vst [vmem:[%s6 + $0x70] sm:$0x18] %v465
    %498 = vst [vmem:[%s6 + $0x78] sm:$0x18] %v466
    // Predicated region
    $region22: #{tpu_custom_call.1} parent=1 // pred_check
      _
    $region23: #{tpu_custom_call.1} parent=1 // pred_check_branch
      %500 = sbr.rel (0) target = $region25
    $region24: #{tpu_custom_call.1} parent=1 // pred_region
      %s502 = ssub.s32 256, 256
      %503 = vsyncadd [#allocation3], %s502
      %s505 = sshll.u32 [#allocation2], 4
      %s506 = int_to_ptr.vmem [resolvable:$true] %s505
      %508 = dma.vmem_to_hbm [thread:$0]  %s506, 256, %s5, [#allocation3]
    $region25: #{tpu_custom_call.1} parent=1 // pred_fallthru
      _
    // Predicated region
    $region26: #{tpu_custom_call.1} parent=1 // pred_check
      _
    $region27: #{tpu_custom_call.1} parent=1 // pred_check_branch
      %510 = sbr.rel (0) target = $region29
    $region28: #{tpu_custom_call.1} parent=1 // pred_region
      _
    $region29: #{tpu_custom_call.1} parent=1 // pred_fallthru
      _
    // Predicated region
    $region30: #{tpu_custom_call.1} parent=1 // pred_check
      _
    $region31: #{tpu_custom_call.1} parent=1 // pred_check_branch
      %512 = sbr.rel (0) target = $region33
    $region32: #{tpu_custom_call.1} parent=1 // pred_region
      %513 = dma.done [#allocation3], 256
    $region33: #{tpu_custom_call.1} parent=1 // pred_fallthru
      _
    // Predicated region
    $region34: #{tpu_custom_call.1} parent=1 // pred_check
      _
    $region35: #{tpu_custom_call.1} parent=1 // pred_check_branch
      %515 = sbr.rel (0) target = $region37
    $region36: #{tpu_custom_call.1} parent=1 // pred_region
      _
    $region37: #{tpu_custom_call.1} parent=1 // pred_fallthru
      _
    %516 = vsyncpa [#allocation3], 1

</llo_original>
